<compile_context>
chip_gen: v5e
topology: v5e:2x2
jax: 0.10.0
libtpu: 0.0.40
codegen_flags: <defaults>
</compile_context>

<pallas_src>
import math

import jax
import jax.numpy as jnp
from jax.experimental import pallas as pl
from jax.experimental.pallas import tpu as pltpu


# ----------------------------------------------------------------------------- helpers


def _round_up(x, m):
    return ((x + m - 1) // m) * m


def _bn_fold(bn, eps=1e-5):
    scale = bn["gamma"] / jnp.sqrt(bn["var"] + eps)
    shift = bn["beta"] - bn["mean"] * scale
    return scale, shift


def _compiler_params(semantics=("arbitrary",)):
    return pltpu.CompilerParams(dimension_semantics=semantics,
                                vmem_limit_bytes=32 * 1024 * 1024)


def _full_spec(a):
    nd = a.ndim
    return pl.BlockSpec(a.shape, lambda i, _nd=nd: (0,) * _nd)


def _geom(N, H, W):
    """Canonical flattened padded-NHWC geometry for an activation of spatial size HxW."""
    Hp = H + 2
    Wp = _round_up(W + 2, 8)           # sublane-aligned row stride
    NR = N * Hp * Wp                   # multiple of 8
    LEAD = Wp + 8                      # >= Wp+1 and a multiple of 8
    MTOT = LEAD + NR + (Wp + 8)
    return dict(N=N, H=H, W=W, Hp=Hp, Wp=Wp, NR=NR, LEAD=LEAD, MTOT=MTOT)


def _row_mask(geom):
    """(NR, 1) f32 {0,1} mask of rows that hold real (non-halo) output positions."""
    r = jnp.arange(geom["NR"], dtype=jnp.int32)
    i = (r // geom["Wp"]) % geom["Hp"]
    j = r % geom["Wp"]
    valid = (i >= 1) & (i <= geom["H"]) & (j >= 1) & (j <= geom["W"])
    return valid.astype(jnp.float32).reshape(geom["NR"], 1)


def _canonical_to_nhwc(buf, geom):
    core = buf[geom["LEAD"]:geom["LEAD"] + geom["NR"], :]
    return core.reshape(geom["N"], geom["Hp"], geom["Wp"], buf.shape[-1])


def _phase_buffers(xp_nhwc, geom_out):
    """Even/odd (row, col) phases of a spatially padded NHWC tensor, laid out on the
    canonical grid of the (stride-2) output geometry.  Returns [P00, P01, P10, P11] bf16."""
    Ho, Wo = geom_out["H"], geom_out["W"]
    Hp, Wp = geom_out["Hp"], geom_out["Wp"]
    NR, LEAD, MTOT = geom_out["NR"], geom_out["LEAD"], geom_out["MTOT"]
    N = geom_out["N"]
    C = xp_nhwc.shape[-1]
    bufs = []
    for a in (0, 1):
        for b in (0, 1):
            ph = xp_nhwc[:, a::2, b::2, :][:, :Ho + 1, :Wo + 1, :]
            ph = jnp.pad(ph, ((0, 0), (1, Hp - Ho - 2), (1, Wp - Wo - 2), (0, 0)))
            p = ph.reshape(N * Hp * Wp, C)
            p = jnp.pad(p, ((LEAD, MTOT - LEAD - NR), (0, 0)))
            bufs.append(p.astype(jnp.bfloat16))
    return bufs


# ----------------------------------------------------------------------------- stem kernel


def _stem_kernel(x_ref, w_ref, s_ref, o_ref):
    acc = jnp.dot(x_ref[...], w_ref[...], preferred_element_type=jnp.float32)
    acc = jnp.maximum(acc + s_ref[...], 0.0)
    o_ref[...] = acc.astype(o_ref.dtype)


def _stem(x, p):
    """Conv2d(3, 64, 7, 2, 3) + BN + ReLU via im2col (emitted already padded) + fused matmul."""
    N, H, W, Cin = x.shape
    k, s, pad = 7, 2, 3
    Ho = (H + 2 * pad - k) // s + 1
    Wo = (W + 2 * pad - k) // s + 1
    Kp, C1p = p["w"].shape
    xp = jnp.pad(x, ((0, 0), (pad, pad), (pad, pad), (0, 0)))
    taps = [xp[:, kh:kh + s * Ho:s, kw:kw + s * Wo:s, :] for kh in range(k) for kw in range(k)]
    taps.append(jnp.zeros((N, Ho, Wo, Kp - k * k * Cin), x.dtype))   # K-pad inside the concat
    xcol = jnp.concatenate(taps, axis=-1).reshape(N * Ho * Wo, Kp).astype(jnp.bfloat16)
    M = N * Ho * Wo
    Mp = _round_up(M, 8)
    if Mp != M:
        xcol = jnp.pad(xcol, ((0, Mp - M), (0, 0)))
    bm = 256 if (Mp % 256 == 0 and Mp >= 512) else Mp   # >=2 parallel steps when possible
    out = pl.pallas_call(
        _stem_kernel,
        out_shape=jax.ShapeDtypeStruct((Mp, C1p), jnp.bfloat16),
        grid=(Mp // bm,),
        in_specs=[pl.BlockSpec((bm, Kp), lambda i: (i, 0)),
                  pl.BlockSpec((Kp, C1p), lambda i: (0, 0)),
                  pl.BlockSpec((1, C1p), lambda i: (0, 0))],
        out_specs=pl.BlockSpec((bm, C1p), lambda i: (i, 0)),
        compiler_params=_compiler_params(("parallel",)),
    )(xcol, p["w"], p["shift"])
    return out[:M].reshape(N, Ho, Wo, C1p), Ho, Wo


# ----------------------------------------------------------------------------- fused basic block


def _block_pallas(blk, geom, mode, arrays):
    """One fused BasicBlock: (optional maxpool prologue) + conv1+BN+ReLU + conv2+BN +
    residual (+ fused 1x1 downsample) + ReLU.  mode in {"plain", "pool", "stride2"}."""
    Wp, NR = geom["Wp"], geom["NR"]
    LEAD, MTOT = geom["LEAD"], geom["MTOT"]
    Cin, Cmid, Cout = blk["cin"], blk["cmid"], blk["cout"]
    XCR = NR + 2 * Wp                           # rows of the kw-concatenated operand (stride-1)
    XCR1 = NR + Wp if mode == "stride2" else XCR

    def store_canonical(ref, val):
        # keep the zero lead/halo/tail invariant of the canonical layout
        ref[0:LEAD, :] = jnp.zeros((LEAD, ref.shape[1]), ref.dtype)
        ref[LEAD:LEAD + NR, :] = val.astype(ref.dtype)
        ref[LEAD + NR:MTOT, :] = jnp.zeros((MTOT - LEAD - NR, ref.shape[1]), ref.dtype)

    def conv_s1(xc, src, w_ref, cin):
        # Build [x(kw=-1) | x(kw=0) | x(kw=+1)] once into VMEM scratch (3 shifted copies
        # instead of 9), then 3 sublane-aligned matmuls with K = 3*cin.
        base = LEAD - Wp
        for kw in range(3):
            xc[:, kw * cin:(kw + 1) * cin] = src[base + kw - 1: base + kw - 1 + XCR, :]
        acc = jnp.dot(xc[0:NR, :], w_ref[0], preferred_element_type=jnp.float32)
        acc = acc + jnp.dot(xc[Wp:Wp + NR, :], w_ref[1], preferred_element_type=jnp.float32)
        acc = acc + jnp.dot(xc[2 * Wp:2 * Wp + NR, :], w_ref[2], preferred_element_type=jnp.float32)
        return acc

    def conv_s2(xc, w_ref, p00, p01, p10, p11):
        # Stride-2 conv directly from the input phases laid out on the *output* grid:
        # only output-resolution rows are computed.
        def fill(pa0, pa1):
            xc[:, 0:Cin] = pa0[LEAD:LEAD + XCR1, :]
            xc[:, Cin:2 * Cin] = pa1[LEAD:LEAD + XCR1, :]
            xc[:, 2 * Cin:3 * Cin] = pa0[LEAD + 1:LEAD + 1 + XCR1, :]
        fill(p00, p01)
        acc = jnp.dot(xc[0:NR, :], w_ref[0], preferred_element_type=jnp.float32)
        acc = acc + jnp.dot(xc[Wp:Wp + NR, :], w_ref[2], preferred_element_type=jnp.float32)
        fill(p10, p11)
        acc = acc + jnp.dot(xc[0:NR, :], w_ref[1], preferred_element_type=jnp.float32)
        return acc

    def maxpool9(p00, p01, p10, p11):
        # 3x3 / stride 2 / pad 1 max pool from phases (inputs are post-ReLU, so 0-pad == -inf).
        def rd(p, off):
            return p[LEAD + off:LEAD + off + NR, :]
        m = jnp.maximum(rd(p00, 0), rd(p00, 1))
        m = jnp.maximum(m, rd(p00, Wp))
        m = jnp.maximum(m, rd(p00, Wp + 1))
        m = jnp.maximum(m, rd(p01, 0))
        m = jnp.maximum(m, rd(p01, Wp))
        m = jnp.maximum(m, rd(p10, 0))
        m = jnp.maximum(m, rd(p10, 1))
        m = jnp.maximum(m, rd(p11, 0))
        return m

    def epilogue(mask, acc1, s1_ref, w2_ref, s2_ref, ident_f32, o_ref, xc2, mid):
        a1 = jnp.maximum(acc1 + s1_ref[...], 0.0) * mask        # conv1 + bn1 + relu (+ halo zero)
        store_canonical(mid, a1)
        acc2 = conv_s1(xc2, mid, w2_ref, Cmid)                   # conv2
        out = jnp.maximum(acc2 + s2_ref[...] + ident_f32, 0.0) * mask
        store_canonical(o_ref, out)

    def kernel(*refs):
        if mode == "plain":
            x_ref, mask_ref, w1_ref, s1_ref, w2_ref, s2_ref, o_ref, xc1, xc2, mid = refs
            mask = mask_ref[...]
            acc1 = conv_s1(xc1, x_ref, w1_ref, Cin)
            ident = x_ref[LEAD:LEAD + NR, :].astype(jnp.float32)
            epilogue(mask, acc1, s1_ref, w2_ref, s2_ref, ident, o_ref, xc2, mid)
        elif mode == "pool":
            (p00, p01, p10, p11, mask_ref, w1_ref, s1_ref, w2_ref, s2_ref,
             o_ref, xc1, xc2, mid, pooled) = refs
            mask = mask_ref[...]
            pm = maxpool9(p00, p01, p10, p11).astype(jnp.float32) * mask
            store_canonical(pooled, pm)
            acc1 = conv_s1(xc1, pooled, w1_ref, Cin)
            ident = pooled[LEAD:LEAD + NR, :].astype(jnp.float32)
            epilogue(mask, acc1, s1_ref, w2_ref, s2_ref, ident, o_ref, xc2, mid)
        else:  # "stride2"
            (p00, p01, p10, p11, mask_ref, w1_ref, s1_ref, wd_ref, sd_ref,
             w2_ref, s2_ref, o_ref, xc1, xc2, mid) = refs
            mask = mask_ref[...]
            acc1 = conv_s2(xc1, w1_ref, p00, p01, p10, p11)
            # fused 1x1/stride-2 downsample: reads the (odd, odd) phase at the output rows
            ident = jnp.dot(p11[LEAD:LEAD + NR, :], wd_ref[...],
                            preferred_element_type=jnp.float32) + sd_ref[...]
            epilogue(mask, acc1, s1_ref, w2_ref, s2_ref, ident, o_ref, xc2, mid)

    scratch = [pltpu.VMEM((XCR1, 3 * Cin), jnp.bfloat16),
               pltpu.VMEM((XCR, 3 * Cmid), jnp.bfloat16),
               pltpu.VMEM((MTOT, Cmid), jnp.bfloat16)]
    if mode == "pool":
        scratch.append(pltpu.VMEM((MTOT, Cin), jnp.bfloat16))

    return pl.pallas_call(
        kernel,
        out_shape=jax.ShapeDtypeStruct((MTOT, Cout), jnp.bfloat16),
        grid=(1,),
        in_specs=[_full_spec(a) for a in arrays],
        out_specs=pl.BlockSpec((MTOT, Cout), lambda i: (0, 0)),
        scratch_shapes=scratch,
        compiler_params=_compiler_params(("arbitrary",)),
    )(*arrays)


# ----------------------------------------------------------------------------- head (avgpool + fc)


def _head_kernel(x_ref, s_ref, w_ref, b_ref, feat_ref, out_ref):
    # Global average pool as a small matmul with a precomputed averaging matrix
    # (all non-valid rows of the canonical buffer are zero), then the fc layer.
    feat = jnp.dot(s_ref[...], x_ref[...].astype(jnp.float32),
                   preferred_element_type=jnp.float32)
    feat_ref[...] = feat
    out_ref[...] = jnp.dot(feat.astype(jnp.bfloat16), w_ref[...],
                           preferred_element_type=jnp.float32) + b_ref[...]


def _head(buf, geom, fc, N):
    MTOT, LEAD = geom["MTOT"], geom["LEAD"]
    hw_stride = geom["Hp"] * geom["Wp"]
    inv = 1.0 / float(geom["H"] * geom["W"])
    C = buf.shape[1]
    NP = _round_up(N, 8)
    S = jnp.zeros((NP, MTOT), jnp.float32)
    for n in range(N):
        S = S.at[n, LEAD + n * hw_stride: LEAD + (n + 1) * hw_stride].set(inv)
    NCp = fc["w"].shape[1]
    feat8, logit8 = pl.pallas_call(
        _head_kernel,
        out_shape=(jax.ShapeDtypeStruct((NP, C), jnp.float32),
                   jax.ShapeDtypeStruct((NP, NCp), jnp.float32)),
        grid=(1,),
        in_specs=[pl.BlockSpec((MTOT, C), lambda i: (0, 0)),
                  pl.BlockSpec((NP, MTOT), lambda i: (0, 0)),
                  pl.BlockSpec((C, NCp), lambda i: (0, 0)),
                  pl.BlockSpec((1, NCp), lambda i: (0, 0))],
        out_specs=[pl.BlockSpec((NP, C), lambda i: (0, 0)),
                   pl.BlockSpec((NP, NCp), lambda i: (0, 0))],
        compiler_params=_compiler_params(("arbitrary",)),
    )(buf, S, fc["w"], fc["shift"])
    return feat8[:N], logit8[:N]


# ----------------------------------------------------------------------------- model glue


def modified_resnet18_forward(prep, x_nchw):
    """Returns (flattened_representation (N,512), classification_output (N,num_classes))."""
    x = jnp.transpose(x_nchw, (0, 2, 3, 1)).astype(jnp.float32)       # NCHW -> NHWC
    N = x.shape[0]

    # stem: conv1 + bn1 + relu
    stem_out, Ho, Wo = _stem(x, prep["conv1"])
    assert Ho % 2 == 0 and Wo % 2 == 0

    # maxpool (fused into layer1 block1) -> canonical layout at 1/4 resolution
    geom = _geom(N, Ho // 2, Wo // 2)
    yp = jnp.pad(stem_out, ((0, 0), (1, 1), (1, 1), (0, 0)))
    phases = _phase_buffers(yp, geom)
    mask = _row_mask(geom)
    blk0 = prep["layers"][0][0]
    cur = _block_pallas(blk0, geom, "pool",
                        phases + [mask, blk0["w1"], blk0["s1"], blk0["w2"], blk0["s2"]])

    # remaining basic blocks
    for li, layer in enumerate(prep["layers"]):
        for bi, blk in enumerate(layer):
            if li == 0 and bi == 0:
                continue
            if blk["stride"] == 2:
                assert geom["H"] % 2 == 0 and geom["W"] % 2 == 0
                new_geom = _geom(N, geom["H"] // 2, geom["W"] // 2)
                xp = _canonical_to_nhwc(cur, geom)
                phases = _phase_buffers(xp, new_geom)
                mask = _row_mask(new_geom)
                cur = _block_pallas(blk, new_geom, "stride2",
                                    phases + [mask, blk["w1"], blk["s1"], blk["wd"],
                                              blk["sd"], blk["w2"], blk["s2"]])
                geom = new_geom
            else:
                mask = _row_mask(geom)
                cur = _block_pallas(blk, geom, "plain",
                                    [cur, mask, blk["w1"], blk["s1"], blk["w2"], blk["s2"]])

    # avgpool + flatten + fc
    feat, logits = _head(cur, geom, prep["fc"], N)
    return feat, logits[:, :prep["num_classes"]]


# ----------------------------------------------------------------------------- params


def init_params(key, num_classes=10):
    keys = iter(jax.random.split(key, 64))

    def conv(shape):
        cout, cin, kh, kw = shape
        fan_in = cin * kh * kw
        return jax.random.normal(next(keys), shape, jnp.float32) * math.sqrt(2.0 / fan_in)

    def bn(c):
        return dict(gamma=jnp.ones((c,), jnp.float32), beta=jnp.zeros((c,), jnp.float32),
                    mean=jnp.zeros((c,), jnp.float32), var=jnp.ones((c,), jnp.float32))

    def make_block(cin, cout, stride):
        p = dict(conv1=conv((cout, cin, 3, 3)), bn1=bn(cout),
                 conv2=conv((cout, cout, 3, 3)), bn2=bn(cout), stride=stride)
        if stride != 1 or cin != cout:
            p["down_conv"] = conv((cout, cin, 1, 1))
            p["down_bn"] = bn(cout)
        return p

    params = dict(conv1=conv((64, 3, 7, 7)), bn1=bn(64))
    layers = []
    cin = 64
    for cout, stride in [(64, 1), (128, 2), (256, 2), (512, 2)]:
        layers.append([make_block(cin, cout, stride), make_block(cout, cout, 1)])
        cin = cout
    params["layers"] = layers
    params["fc_w"] = jax.random.normal(next(keys), (num_classes, 512), jnp.float32) * math.sqrt(1.0 / 512)
    params["fc_b"] = jnp.zeros((num_classes,), jnp.float32)
    return params


def prepare_params(params):
    """One-time (outside the forward path): fold BN, reshape to kernel layouts (kw-merged taps),
    zero-pad channel dims to multiples of 128 and cast weights to bf16."""
    def pad_c(c):
        return _round_up(c, 128)

    def prep3x3(w, bn_p):
        cout, cin = w.shape[0], w.shape[1]
        scale, shift = _bn_fold(bn_p)
        cin_p, cout_p = pad_c(cin), pad_c(cout)
        wt = jnp.transpose(w, (2, 3, 1, 0)) * scale[None, None, None, :]     # (3,3,cin,cout)
        wt = jnp.pad(wt, ((0, 0), (0, 0), (0, cin_p - cin), (0, cout_p - cout)))
        wt = wt.reshape(3, 3 * cin_p, cout_p).astype(jnp.bfloat16)            # kw-merged K axis
        sh = jnp.pad(shift, (0, cout_p - cout)).reshape(1, cout_p).astype(jnp.float32)
        return wt, sh

    def prep1x1(w, bn_p):
        cout, cin = w.shape[0], w.shape[1]
        scale, shift = _bn_fold(bn_p)
        cin_p, cout_p = pad_c(cin), pad_c(cout)
        wm = jnp.transpose(w[:, :, 0, 0]) * scale[None, :]
        wm = jnp.pad(wm, ((0, cin_p - cin), (0, cout_p - cout))).astype(jnp.bfloat16)
        sh = jnp.pad(shift, (0, cout_p - cout)).reshape(1, cout_p).astype(jnp.float32)
        return wm, sh

    # stem conv (im2col layout)
    w = params["conv1"]
    cout, cin, kh, kw = w.shape
    scale, shift = _bn_fold(params["bn1"])
    wm = jnp.transpose(w, (2, 3, 1, 0)).reshape(kh * kw * cin, cout) * scale[None, :]
    Kp = _round_up(kh * kw * cin, 128)
    cout_p = pad_c(cout)
    prep = dict(conv1=dict(
        w=jnp.pad(wm, ((0, Kp - kh * kw * cin), (0, cout_p - cout))).astype(jnp.bfloat16),
        shift=jnp.pad(shift, (0, cout_p - cout)).reshape(1, cout_p).astype(jnp.float32)))

    layers = []
    for layer in params["layers"]:
        blocks = []
        for blk in layer:
            w1, s1 = prep3x3(blk["conv1"], blk["bn1"])
            w2, s2 = prep3x3(blk["conv2"], blk["bn2"])
            b = dict(stride=blk["stride"],
                     cin=pad_c(blk["conv1"].shape[1]),
                     cmid=pad_c(blk["conv1"].shape[0]),
                     cout=pad_c(blk["conv2"].shape[0]),
                     w1=w1, s1=s1, w2=w2, s2=s2)
            if "down_conv" in blk:
                b["wd"], b["sd"] = prep1x1(blk["down_conv"], blk["down_bn"])
            blocks.append(b)
        layers.append(blocks)
    prep["layers"] = layers

    nc = params["fc_w"].shape[0]
    ncp = pad_c(nc)
    prep["fc"] = dict(
        w=jnp.pad(params["fc_w"].T, ((0, 0), (0, ncp - nc))).astype(jnp.bfloat16),
        shift=jnp.pad(params["fc_b"], (0, ncp - nc)).reshape(1, ncp).astype(jnp.float32))
    prep["num_classes"] = nc
    return prep


# ----------------------------------------------------------------------------- main


if __name__ == "__main__":
    num_classes = 10
    x = jax.random.normal(jax.random.PRNGKey(0), (2, 3, 32, 32), dtype=jnp.float32)  # NCHW

    params = init_params(jax.random.PRNGKey(42), num_classes=num_classes)
    prep = prepare_params(params)   # BN folding / padding / bf16 cast done once, outside forward

    feat, logits = modified_resnet18_forward(prep, x)
    feat = jax.block_until_ready(feat)
    logits = jax.block_until_ready(logits)

    assert feat.shape == (2, 512), feat.shape
    assert logits.shape == (2, num_classes), logits.shape
    assert bool(jnp.all(jnp.isfinite(feat))) and bool(jnp.all(jnp.isfinite(logits)))
    print("KERNEL_OK")
</pallas_src>

<mosaic_0001>
module attributes {stable_mosaic.version = 11 : i64} {
  func.func @_stem_kernel(%arg0: i32, %arg1: memref<256x256xbf16, #tpu.memory_space<vmem>>, %arg2: memref<256x128xbf16, #tpu.memory_space<vmem>>, %arg3: memref<1x128xf32, #tpu.memory_space<vmem>>, %arg4: memref<256x128xbf16, #tpu.memory_space<vmem>>) attributes {dimension_semantics = [#tpu.dimension_semantics<parallel>], iteration_bounds = array<i64: 2>, scalar_prefetch = 0 : i64, scratch_operands = 0 : i64, tpu.core_type = #tpu.core_type<tc>, window_params = [{transform_indices = @transform_0, window_bounds = array<i64: 256, 256>}, {pipeline_mode = #tpu.pipeline_mode<synchronous>, transform_indices = @transform_1, window_bounds = array<i64: 256, 128>}, {pipeline_mode = #tpu.pipeline_mode<synchronous>, transform_indices = @transform_2, window_bounds = array<i64: 1, 128>}, {transform_indices = @transform_3, window_bounds = array<i64: 256, 128>}]} {
    %c0 = arith.constant 0 : index
    %c0_0 = arith.constant 0 : index
    %0 = vector.load %arg1[%c0, %c0_0] : memref<256x256xbf16, #tpu.memory_space<vmem>>, vector<256x256xbf16>
    %c0_1 = arith.constant 0 : index
    %c0_2 = arith.constant 0 : index
    %1 = vector.load %arg2[%c0_1, %c0_2] : memref<256x128xbf16, #tpu.memory_space<vmem>>, vector<256x128xbf16>
    %cst = arith.constant dense<0.000000e+00> : vector<256x128xf32>
    %2 = tpu.matmul %0, %1, %cst {dimension_numbers = #tpu.dot_dimension_numbers<[1], [0], [0], [1], [0, 0, 1, 1], [], []>} : vector<256x256xbf16>, vector<256x128xbf16>, vector<256x128xf32> -> vector<256x128xf32>
    %c0_3 = arith.constant 0 : index
    %c0_4 = arith.constant 0 : index
    %3 = vector.load %arg3[%c0_3, %c0_4] : memref<1x128xf32, #tpu.memory_space<vmem>>, vector<1x128xf32>
    %4 = vector.broadcast %3 : vector<1x128xf32> to vector<256x128xf32>
    %5 = arith.addf %2, %4 : vector<256x128xf32>
    %cst_5 = arith.constant 0.000000e+00 : f32
    %6 = vector.broadcast %cst_5 : f32 to vector<256x128xf32>
    %7 = arith.maximumf %5, %6 : vector<256x128xf32>
    %8 = arith.truncf %7 : vector<256x128xf32> to vector<256x128xbf16>
    %c0_6 = arith.constant 0 : index
    %c0_7 = arith.constant 0 : index
    %9 = vector.load %arg4[%c0_6, %c0_7] : memref<256x128xbf16, #tpu.memory_space<vmem>>, vector<256x128xbf16>
    tpu.vector_store %arg4[%c0_6, %c0_7], %8 {strides = array<i32>} : memref<256x128xbf16, #tpu.memory_space<vmem>>, vector<256x128xbf16>,
    return
  }
  func.func @transform_0(%arg0: i32) -> (i32, i32) {
    %c0_i32 = arith.constant 0 : i32
    %c0_i32_0 = arith.constant 0 : i32
    return %arg0, %c0_i32 : i32, i32
  }
  func.func @transform_1(%arg0: i32) -> (i32, i32) {
    %c0_i32 = arith.constant 0 : i32
    %c0_i32_0 = arith.constant 0 : i32
    %c0_i32_1 = arith.constant 0 : i32
    return %c0_i32, %c0_i32_0 : i32, i32
  }
  func.func @transform_2(%arg0: i32) -> (i32, i32) {
    %c0_i32 = arith.constant 0 : i32
    %c0_i32_0 = arith.constant 0 : i32
    %c0_i32_1 = arith.constant 0 : i32
    return %c0_i32, %c0_i32_0 : i32, i32
  }
  func.func @transform_3(%arg0: i32) -> (i32, i32) {
    %c0_i32 = arith.constant 0 : i32
    %c0_i32_0 = arith.constant 0 : i32
    return %arg0, %c0_i32 : i32, i32
  }
}

</mosaic_0001>

<llo_original>
// kernel: tpu_custom_call.1
$region0: #{tpu_custom_call.1}
  #allocation0 [shape = 'u32[]', space=smem, size = 0x4, offset = 0x4, fixed_abs, tag = 'smem constant byte address 0x4 - core index']
  #allocation1 [shape = 'u32[72,128]{1,0:T(1,128)}', space=vmem, size = 0x9000, scoped, tag = 'internal scratch']
  %s0 = inlined_call_operand.hbm [shape: bf16[512,256], index: 0, kind: input, shape index: {}]
  %s1 = inlined_call_operand.hbm [shape: bf16[256,128], index: 1, kind: input, shape index: {}]
  %s2 = inlined_call_operand.vmem [shape: f32[1,128], index: 2, kind: input, shape index: {}]
  %s3 = inlined_call_operand.hbm [shape: bf16[512,128], index: 3, kind: output, shape index: {}]
  %s4 = sld [smem:[#allocation0]]
  $region53: #{tpu_custom_call.1} parent=0
    _
  %s6 = ssub.s32 1, %s4
  %s7 = scalar_select 0, %s6, %s4
  $region1: #{tpu_custom_call.1} parent=0
    #allocation2 [shape = 'u8[262144]{0}', space=vmem, size = 0x40000, scoped, tag = 'input window, operand 0']
    #allocation3 [shape = 's32[2]{0}', space=sflag, size = 0x8, scoped, tag = 'scoped memory for tpu_custom_call.1']
    #allocation4 [shape = 's32[2]{0}', space=sflag, size = 0x8, scoped, tag = 'scoped memory for tpu_custom_call.1']
    #allocation5 [shape = 'u8[65536]{0}', space=vmem, size = 0x10000, scoped, tag = 'input window, operand 1, single buffered']
    #allocation6 [shape = 's32[1]{0}', space=sflag, size = 0x4, scoped, tag = 'scoped memory for tpu_custom_call.1']
    #allocation7 [shape = 'u8[131072]{0}', space=vmem, size = 0x20000, scoped, tag = 'output window, operand 0']
    %8 = vsyncpa [#allocation3], 0
    %s9 = scalar_lea.sflag [#allocation3], 1
    %10 = vsyncpa %s9, 0
    %11 = vsyncpa [#allocation6], 0
    %12 = vsyncpa [#allocation4], 0
    %s13 = scalar_lea.sflag [#allocation4], 1
    %14 = vsyncpa %s13, 0
    loop: start=0, step=1, limit=4
    $region2: #{tpu_custom_call.1} parent=1 // loop_pre_header
      _
    $region3: #{tpu_custom_call.1} parent=1 // loop_header
      %s16 = sphi 0, %s20
      %p17 = scmp.ge.s32.totalorder %s16, 4
      %s26 = sphi 0, %s28
      %s29 = sphi 0, %s26
      %s30 = sphi 0, %s29
      %s46 = sphi 0, %s30
      %s50 = sphi 0, %s50
      %s52 = sphi 0, %s50
      %s53 = sphi 0, %s52
      %s67 = sphi 0, %s53
      %s71 = sphi 0, %s71
      %s73 = sphi 0, %s71
      %s74 = sphi 0, %s73
      %s88 = sphi 0, %s74
      %s94 = sphi 0, %s96
      %s97 = sphi 0, %s94
      %s98 = sphi 0, %s97
      %s114 = sphi 0, %s98
    $region4: #{tpu_custom_call.1} parent=1 // loop_header_branch
      %19 = sbr.rel (%p17) target = $region8
    $region5: #{tpu_custom_call.1} parent=1 // loop_body
      %s21 = ssub.s32 %s16, 1
      %s22 = ssub.s32 %s16, 2
      %s23 = sadd.s32 %s16, 1
      %s24 = ssub.s32 %s16, %s23
      %p25 = scmp.eq.s32.totalorder %s24, 0
      %s27 = sadd.s32 %s26, 1
      %s28 = scalar_select %p25, %s26, %s27
      %p31 = pneg %p25
      %p32 = scmp.eq.s32.totalorder %s16, 1
      %p33 = por %p31, %p32
      %p34 = scmp.ne.s32.totalorder %s26, %s29
      %p35 = scmp.eq.s32.totalorder %s16, 0
      %p36 = por %p34, %p35
      %p37 = scmp.ne.s32.totalorder %s26, %s29
      %p38 = scmp.eq.s32.totalorder %s21, 1
      %p39 = por %p37, %p38
      %p40 = scmp.ne.s32.totalorder %s29, %s30
      %p41 = scmp.eq.s32.totalorder %s21, 0
      %p42 = por %p40, %p41
      %p43 = scmp.ne.s32.totalorder %s29, %s30
      %p44 = scmp.eq.s32.totalorder %s22, 1
      %p45 = por %p43, %p44
      %p47 = scmp.ne.s32.totalorder %s30, %s46
      %p48 = scmp.eq.s32.totalorder %s22, 0
      %p49 = por %p47, %p48
      %s51 = sadd.s32 %s50, 1
      %p54 = scmp.eq.s32.totalorder %s16, 1
      %p55 = scmp.ne.s32.totalorder %s50, %s52
      %p56 = scmp.eq.s32.totalorder %s16, 0
      %p57 = por %p55, %p56
      %p58 = scmp.ne.s32.totalorder %s50, %s52
      %p59 = scmp.eq.s32.totalorder %s21, 1
      %p60 = por %p58, %p59
      %p61 = scmp.ne.s32.totalorder %s52, %s53
      %p62 = scmp.eq.s32.totalorder %s21, 0
      %p63 = por %p61, %p62
      %p64 = scmp.ne.s32.totalorder %s52, %s53
      %p65 = scmp.eq.s32.totalorder %s22, 1
      %p66 = por %p64, %p65
      %p68 = scmp.ne.s32.totalorder %s53, %s67
      %p69 = scmp.eq.s32.totalorder %s22, 0
      %p70 = por %p68, %p69
      %s72 = sadd.s32 %s71, 1
      %p75 = scmp.eq.s32.totalorder %s16, 1
      %p76 = scmp.ne.s32.totalorder %s71, %s73
      %p77 = scmp.eq.s32.totalorder %s16, 0
      %p78 = por %p76, %p77
      %p79 = scmp.ne.s32.totalorder %s71, %s73
      %p80 = scmp.eq.s32.totalorder %s21, 1
      %p81 = por %p79, %p80
      %p82 = scmp.ne.s32.totalorder %s73, %s74
      %p83 = scmp.eq.s32.totalorder %s21, 0
      %p84 = por %p82, %p83
      %p85 = scmp.ne.s32.totalorder %s73, %s74
      %p86 = scmp.eq.s32.totalorder %s22, 1
      %p87 = por %p85, %p86
      %p89 = scmp.ne.s32.totalorder %s74, %s88
      %p90 = scmp.eq.s32.totalorder %s22, 0
      %p91 = por %p89, %p90
      %s92 = ssub.s32 %s16, %s23
      %p93 = scmp.eq.s32.totalorder %s92, 0
      %s95 = sadd.s32 %s94, 1
      %s96 = scalar_select %p93, %s94, %s95
      %p99 = pneg %p93
      %p100 = scmp.eq.s32.totalorder %s16, 1
      %p101 = por %p99, %p100
      %p102 = scmp.ne.s32.totalorder %s94, %s97
      %p103 = scmp.eq.s32.totalorder %s16, 0
      %p104 = por %p102, %p103
      %p105 = scmp.ne.s32.totalorder %s94, %s97
      %p106 = scmp.eq.s32.totalorder %s21, 1
      %p107 = por %p105, %p106
      %p108 = scmp.ne.s32.totalorder %s97, %s98
      %p109 = scmp.eq.s32.totalorder %s21, 0
      %p110 = por %p108, %p109
      %p111 = scmp.ne.s32.totalorder %s97, %s98
      %p112 = scmp.eq.s32.totalorder %s22, 1
      %p113 = por %p111, %p112
      %p115 = scmp.ne.s32.totalorder %s98, %s114
      %p116 = scmp.eq.s32.totalorder %s22, 0
      %p117 = por %p115, %p116
      %p118 = scmp.le.s32.totalorder 1, %s16
      %p119 = scmp.lt.s32.totalorder %s16, 3
      %p120 = pnand %p118, %p119
      %p121 = pneg %p120
      // Predicated region
      $region9: #{tpu_custom_call.1} parent=5 // pred_check
        _
      $region10: #{tpu_custom_call.1} parent=5 // pred_check_branch
        %123 = sbr.rel (%p120) target = $region12
      $region11: #{tpu_custom_call.1} parent=5 // pred_region
        %s124 = ssub.s32 %s16, 1
        // Predicated region
        $region13: #{tpu_custom_call.1} parent=11 // pred_check
          %p125 = pneg %p63
        $region14: #{tpu_custom_call.1} parent=11 // pred_check_branch
          %127 = sbr.rel (%p125) target = $region16
        $region15: #{tpu_custom_call.1} parent=11 // pred_region
          %129 = vsyncadd [#allocation6], 0
          %s130 = sshll.u32 %s1, 4
          %s131 = int_to_ptr.hbm [resolvable:$true] %s130
          %s132 = sshll.u32 [#allocation5], 4
          %s133 = int_to_ptr.vmem [resolvable:$true] %s132
          %138 = dma.hbm_to_vmem [thread:$0]  %s131, 2048, %s133, [#allocation6], 64, 64, 4
        $region16: #{tpu_custom_call.1} parent=11 // pred_fallthru
          _
        // Predicated region
        $region17: #{tpu_custom_call.1} parent=11 // pred_check
          %p139 = pneg %p84
        $region18: #{tpu_custom_call.1} parent=11 // pred_check_branch
          %141 = sbr.rel (%p139) target = $region20
        $region19: #{tpu_custom_call.1} parent=11 // pred_region
          _
        $region20: #{tpu_custom_call.1} parent=11 // pred_fallthru
          _
      $region12: #{tpu_custom_call.1} parent=5 // pred_fallthru
        _
      %p142 = scmp.lt.s32.totalorder %s16, 2
      // Predicated region
      $region21: #{tpu_custom_call.1} parent=5 // pred_check
        %p143 = pneg %p142
      $region22: #{tpu_custom_call.1} parent=5 // pred_check_branch
        %145 = sbr.rel (%p143) target = $region24
      $region23: #{tpu_custom_call.1} parent=5 // pred_region
        // Predicated region
        $region25: #{tpu_custom_call.1} parent=23 // pred_check
          %p146 = pneg %p36
        $region26: #{tpu_custom_call.1} parent=23 // pred_check_branch
          %148 = sbr.rel (%p146) target = $region28
        $region27: #{tpu_custom_call.1} parent=23 // pred_region
          %s149 = sand.u32 %s26, 1
          %s150 = scalar_lea.sflag [#allocation3], %s149
          %s151 = sand.u32 %s26, 1
          %s152 = smul.addr %s151, 256
          %s153 = scalar_lea.vmem [#allocation2], %s152
          %s154 = smul.u32 32, %s16
          %156 = vsyncadd %s150, 0
          %s157 = smul.addr %s154, 2
          %s158 = smul.addr %s157, 4
          %s159 = scalar_lea.hbm %s0, %s158
          %s160 = sshll.u32 %s159, 4
          %s161 = int_to_ptr.hbm [resolvable:$true] %s160
          %s162 = sshll.u32 %s153, 4
          %s163 = int_to_ptr.vmem [resolvable:$true] %s162
          %168 = dma.hbm_to_vmem [thread:$0]  %s161, 4096, %s163, %s150, 128, 128, 8
        $region28: #{tpu_custom_call.1} parent=23 // pred_fallthru
          _
      $region24: #{tpu_custom_call.1} parent=5 // pred_fallthru
        _
      %p169 = scmp.le.s32.totalorder 1, %s16
      %p170 = scmp.lt.s32.totalorder %s16, 3
      %p171 = pnand %p169, %p170
      %p172 = pneg %p171
      // Predicated region
      $region29: #{tpu_custom_call.1} parent=5 // pred_check
        _
      $region30: #{tpu_custom_call.1} parent=5 // pred_check_branch
        %174 = sbr.rel (%p171) target = $region32
      $region31: #{tpu_custom_call.1} parent=5 // pred_region
        %s175 = ssub.s32 %s16, 1
        %s176 = sand.u32 %s29, 1
        %s177 = scalar_lea.sflag [#allocation3], %s176
        %s178 = sand.u32 %s29, 1
        %s179 = smul.addr %s178, 256
        %s180 = scalar_lea.vmem [#allocation2], %s179
        // Predicated region
        $region33: #{tpu_custom_call.1} parent=31 // pred_check
          %p181 = pneg %p42
        $region34: #{tpu_custom_call.1} parent=31 // pred_check_branch
          %183 = sbr.rel (%p181) target = $region36
        $region35: #{tpu_custom_call.1} parent=31 // pred_region
          %185 = dma.done %s177, 4096
        $region36: #{tpu_custom_call.1} parent=31 // pred_fallthru
          _
        // Predicated region
        $region37: #{tpu_custom_call.1} parent=31 // pred_check
          %p186 = pneg %p63
        $region38: #{tpu_custom_call.1} parent=31 // pred_check_branch
          %188 = sbr.rel (%p186) target = $region40
        $region39: #{tpu_custom_call.1} parent=31 // pred_region
          %190 = dma.done [#allocation6], 2048
        $region40: #{tpu_custom_call.1} parent=31 // pred_fallthru
          _
        %s191 = sand.u32 %s29, 1
        %s192 = scalar_lea.sflag [#allocation3], %s191
        %s193 = sand.u32 %s29, 1
        %s194 = smul.addr %s193, 256
        %s195 = scalar_lea.vmem [#allocation2], %s194
        %p196 = pneg %p42
        %p197 = pneg %p39
        %p198 = pneg %p63
        %p199 = pneg %p60
        %p200 = pneg %p84
        %p201 = pneg %p81
        %p202 = pneg %p110
        %p203 = pneg %p107
        %s204 = sand.u32 %s97, 1
        %s205 = scalar_lea.sflag [#allocation4], %s204
        %s206 = sand.u32 %s97, 1
        %s207 = smul.addr %s206, 128
        %s208 = scalar_lea.vmem [#allocation7], %s207
        %s209 = smul.u32 32, %s21
        %s210 = smul.u32 32, %s21
        %v211 = vld [vmem:[%s180] sm:$0xff]
        %v212 = vld [vmem:[%s180 + $0x8] sm:$0xff]
        %v213 = vld [vmem:[%s180 + $0x10] sm:$0xff]
        %v214 = vld [vmem:[%s180 + $0x18] sm:$0xff]
        %v215 = vld [vmem:[%s180 + $0x20] sm:$0xff]
        %v216 = vld [vmem:[%s180 + $0x28] sm:$0xff]
        %v217 = vld [vmem:[%s180 + $0x30] sm:$0xff]
        %v218 = vld [vmem:[%s180 + $0x38] sm:$0xff]
        %v219 = vld [vmem:[%s180 + $0x40] sm:$0xff]
        %v220 = vld [vmem:[%s180 + $0x48] sm:$0xff]
        %v221 = vld [vmem:[%s180 + $0x50] sm:$0xff]
        %v222 = vld [vmem:[%s180 + $0x58] sm:$0xff]
        %v223 = vld [vmem:[%s180 + $0x60] sm:$0xff]
        %v224 = vld [vmem:[%s180 + $0x68] sm:$0xff]
        %v225 = vld [vmem:[%s180 + $0x70] sm:$0xff]
        %v226 = vld [vmem:[%s180 + $0x78] sm:$0xff]
        %v227 = vld [vmem:[%s180 + $0x80] sm:$0xff]
        %v228 = vld [vmem:[%s180 + $0x88] sm:$0xff]
        %v229 = vld [vmem:[%s180 + $0x90] sm:$0xff]
        %v230 = vld [vmem:[%s180 + $0x98] sm:$0xff]
        %v231 = vld [vmem:[%s180 + $0xa0] sm:$0xff]
        %v232 = vld [vmem:[%s180 + $0xa8] sm:$0xff]
        %v233 = vld [vmem:[%s180 + $0xb0] sm:$0xff]
        %v234 = vld [vmem:[%s180 + $0xb8] sm:$0xff]
        %v235 = vld [vmem:[%s180 + $0xc0] sm:$0xff]
        %v236 = vld [vmem:[%s180 + $0xc8] sm:$0xff]
        %v237 = vld [vmem:[%s180 + $0xd0] sm:$0xff]
        %v238 = vld [vmem:[%s180 + $0xd8] sm:$0xff]
        %v239 = vld [vmem:[%s180 + $0xe0] sm:$0xff]
        %v240 = vld [vmem:[%s180 + $0xe8] sm:$0xff]
        %v241 = vld [vmem:[%s180 + $0xf0] sm:$0xff]
        %v242 = vld [vmem:[%s180 + $0xf8] sm:$0xff]
        %v243 = vld [vmem:[#allocation5] sm:$0xf]
        %v244 = vld [vmem:[#allocation5 + $0x4] sm:$0xf]
        %v245 = vld [vmem:[#allocation5 + $0x8] sm:$0xf]
        %v246 = vld [vmem:[#allocation5 + $0xc] sm:$0xf]
        %v247 = vld [vmem:[#allocation5 + $0x10] sm:$0xf]
        %v248 = vld [vmem:[#allocation5 + $0x14] sm:$0xf]
        %v249 = vld [vmem:[#allocation5 + $0x18] sm:$0xf]
        %v250 = vld [vmem:[#allocation5 + $0x1c] sm:$0xf]
        %v251 = vld [vmem:[#allocation5 + $0x20] sm:$0xf]
        %v252 = vld [vmem:[#allocation5 + $0x24] sm:$0xf]
        %v253 = vld [vmem:[#allocation5 + $0x28] sm:$0xf]
        %v254 = vld [vmem:[#allocation5 + $0x2c] sm:$0xf]
        %v255 = vld [vmem:[#allocation5 + $0x30] sm:$0xf]
        %v256 = vld [vmem:[#allocation5 + $0x34] sm:$0xf]
        %v257 = vld [vmem:[#allocation5 + $0x38] sm:$0xf]
        %v258 = vld [vmem:[#allocation5 + $0x3c] sm:$0xf]
        %v259 = vld [vmem:[#allocation5 + $0x40] sm:$0xf]
        %v260 = vld [vmem:[#allocation5 + $0x44] sm:$0xf]
        %v261 = vld [vmem:[#allocation5 + $0x48] sm:$0xf]
        %v262 = vld [vmem:[#allocation5 + $0x4c] sm:$0xf]
        %v263 = vld [vmem:[#allocation5 + $0x50] sm:$0xf]
        %v264 = vld [vmem:[#allocation5 + $0x54] sm:$0xf]
        %v265 = vld [vmem:[#allocation5 + $0x58] sm:$0xf]
        %v266 = vld [vmem:[#allocation5 + $0x5c] sm:$0xf]
        %v267 = vld [vmem:[#allocation5 + $0x60] sm:$0xf]
        %v268 = vld [vmem:[#allocation5 + $0x64] sm:$0xf]
        %v269 = vld [vmem:[#allocation5 + $0x68] sm:$0xf]
        %v270 = vld [vmem:[#allocation5 + $0x6c] sm:$0xf]
        %v271 = vld [vmem:[#allocation5 + $0x70] sm:$0xf]
        %v272 = vld [vmem:[#allocation5 + $0x74] sm:$0xf]
        %v273 = vld [vmem:[#allocation5 + $0x78] sm:$0xf]
        %v274 = vld [vmem:[#allocation5 + $0x7c] sm:$0xf]
        %v275 = vld [vmem:[%s2] sm:$0x1]
        %v277 = vperm.slane %v275, 0
        %v311 = vunpack.c.l.b16 %v211
        %v312 = vunpack.c.h.b16 %v211
        %v313 = vunpack.c.l.b16 %v212
        %v314 = vunpack.c.h.b16 %v212
        %v315 = vunpack.c.l.b16 %v213
        %v316 = vunpack.c.h.b16 %v213
        %v317 = vunpack.c.l.b16 %v214
        %v318 = vunpack.c.h.b16 %v214
        %v319 = vunpack.c.l.b16 %v215
        %v320 = vunpack.c.h.b16 %v215
        %v321 = vunpack.c.l.b16 %v216
        %v322 = vunpack.c.h.b16 %v216
        %v323 = vunpack.c.l.b16 %v217
        %v324 = vunpack.c.h.b16 %v217
        %v325 = vunpack.c.l.b16 %v218
        %v326 = vunpack.c.h.b16 %v218
        %v327 = vunpack.c.l.b16 %v219
        %v328 = vunpack.c.h.b16 %v219
        %v329 = vunpack.c.l.b16 %v220
        %v330 = vunpack.c.h.b16 %v220
        %v331 = vunpack.c.l.b16 %v221
        %v332 = vunpack.c.h.b16 %v221
        %v333 = vunpack.c.l.b16 %v222
        %v334 = vunpack.c.h.b16 %v222
        %v335 = vunpack.c.l.b16 %v223
        %v336 = vunpack.c.h.b16 %v223
        %v337 = vunpack.c.l.b16 %v224
        %v338 = vunpack.c.h.b16 %v224
        %v339 = vunpack.c.l.b16 %v225
        %v340 = vunpack.c.h.b16 %v225
        %v341 = vunpack.c.l.b16 %v226
        %v342 = vunpack.c.h.b16 %v226
        %v343 = vunpack.c.l.b16 %v227
        %v344 = vunpack.c.h.b16 %v227
        %v345 = vunpack.c.l.b16 %v228
        %v346 = vunpack.c.h.b16 %v228
        %v347 = vunpack.c.l.b16 %v229
        %v348 = vunpack.c.h.b16 %v229
        %v349 = vunpack.c.l.b16 %v230
        %v350 = vunpack.c.h.b16 %v230
        %v351 = vunpack.c.l.b16 %v231
        %v352 = vunpack.c.h.b16 %v231
        %v353 = vunpack.c.l.b16 %v232
        %v354 = vunpack.c.h.b16 %v232
        %v355 = vunpack.c.l.b16 %v233
        %v356 = vunpack.c.h.b16 %v233
        %v357 = vunpack.c.l.b16 %v234
        %v358 = vunpack.c.h.b16 %v234
        %v359 = vunpack.c.l.b16 %v235
        %v360 = vunpack.c.h.b16 %v235
        %v361 = vunpack.c.l.b16 %v236
        %v362 = vunpack.c.h.b16 %v236
        %v363 = vunpack.c.l.b16 %v237
        %v364 = vunpack.c.h.b16 %v237
        %v365 = vunpack.c.l.b16 %v238
        %v366 = vunpack.c.h.b16 %v238
        %v367 = vunpack.c.l.b16 %v239
        %v368 = vunpack.c.h.b16 %v239
        %v369 = vunpack.c.l.b16 %v240
        %v370 = vunpack.c.h.b16 %v240
        %v371 = vunpack.c.l.b16 %v241
        %v372 = vunpack.c.h.b16 %v241
        %v373 = vunpack.c.l.b16 %v242
        %v374 = vunpack.c.h.b16 %v242
        %v375 = vpack.c.b16 %v313, %v311
        %v376 = vpack.c.b16 %v314, %v312
        %v377 = vpack.c.b16 %v317, %v315
        %v378 = vpack.c.b16 %v318, %v316
        %v379 = vpack.c.b16 %v321, %v319
        %v380 = vpack.c.b16 %v322, %v320
        %v381 = vpack.c.b16 %v325, %v323
        %v382 = vpack.c.b16 %v326, %v324
        %v383 = vpack.c.b16 %v329, %v327
        %v384 = vpack.c.b16 %v330, %v328
        %v385 = vpack.c.b16 %v333, %v331
        %v386 = vpack.c.b16 %v334, %v332
        %v387 = vpack.c.b16 %v337, %v335
        %v388 = vpack.c.b16 %v338, %v336
        %v389 = vpack.c.b16 %v341, %v339
        %v390 = vpack.c.b16 %v342, %v340
        %v391 = vpack.c.b16 %v345, %v343
        %v392 = vpack.c.b16 %v346, %v344
        %v393 = vpack.c.b16 %v349, %v347
        %v394 = vpack.c.b16 %v350, %v348
        %v395 = vpack.c.b16 %v353, %v351
        %v396 = vpack.c.b16 %v354, %v352
        %v397 = vpack.c.b16 %v357, %v355
        %v398 = vpack.c.b16 %v358, %v356
        %v399 = vpack.c.b16 %v361, %v359
        %v400 = vpack.c.b16 %v362, %v360
        %v401 = vpack.c.b16 %v365, %v363
        %v402 = vpack.c.b16 %v366, %v364
        %v403 = vpack.c.b16 %v369, %v367
        %v404 = vpack.c.b16 %v370, %v368
        %v405 = vpack.c.b16 %v373, %v371
        %v406 = vpack.c.b16 %v374, %v372
        %v471 = vunpack.c.l.b16 %v243
        %v472 = vunpack.c.l.b16 %v244
        %v473 = vunpack.c.l.b16 %v245
        %v474 = vunpack.c.l.b16 %v246
        %v475 = vunpack.c.l.b16 %v247
        %v476 = vunpack.c.l.b16 %v248
        %v477 = vunpack.c.l.b16 %v249
        %v478 = vunpack.c.l.b16 %v250
        %v479 = vunpack.c.l.b16 %v251
        %v480 = vunpack.c.l.b16 %v252
        %v481 = vunpack.c.l.b16 %v253
        %v482 = vunpack.c.l.b16 %v254
        %v483 = vunpack.c.l.b16 %v255
        %v484 = vunpack.c.l.b16 %v256
        %v485 = vunpack.c.l.b16 %v257
        %v486 = vunpack.c.l.b16 %v258
        %v487 = vunpack.c.l.b16 %v259
        %v488 = vunpack.c.l.b16 %v260
        %v489 = vunpack.c.l.b16 %v261
        %v490 = vunpack.c.l.b16 %v262
        %v491 = vunpack.c.l.b16 %v263
        %v492 = vunpack.c.l.b16 %v264
        %v493 = vunpack.c.l.b16 %v265
        %v494 = vunpack.c.l.b16 %v266
        %v495 = vunpack.c.l.b16 %v267
        %v496 = vunpack.c.l.b16 %v268
        %v497 = vunpack.c.l.b16 %v269
        %v498 = vunpack.c.l.b16 %v270
        %v499 = vunpack.c.l.b16 %v271
        %v500 = vunpack.c.l.b16 %v272
        %v501 = vunpack.c.l.b16 %v273
        %v502 = vunpack.c.l.b16 %v274
        %v503 = vpack.c.b16 %v472, %v471
        %v504 = vpack.c.b16 %v474, %v473
        %v505 = vpack.c.b16 %v476, %v475
        %v506 = vpack.c.b16 %v478, %v477
        %v507 = vpack.c.b16 %v480, %v479
        %v508 = vpack.c.b16 %v482, %v481
        %v509 = vpack.c.b16 %v484, %v483
        %v510 = vpack.c.b16 %v486, %v485
        %v511 = vpack.c.b16 %v488, %v487
        %v512 = vpack.c.b16 %v490, %v489
        %v513 = vpack.c.b16 %v492, %v491
        %v514 = vpack.c.b16 %v494, %v493
        %v515 = vpack.c.b16 %v496, %v495
        %v516 = vpack.c.b16 %v498, %v497
        %v517 = vpack.c.b16 %v500, %v499
        %v518 = vpack.c.b16 %v502, %v501
        %535 = vmatpush.bf16.msra.mxu0 %v510
        %536 = vmatpush.bf16.msra.mxu0 %v509
        %537 = vmatpush.bf16.msra.mxu0 %v508
        %538 = vmatpush.bf16.msra.mxu0 %v507
        %539 = vmatpush.bf16.msra.mxu0 %v506
        %540 = vmatpush.bf16.msra.mxu0 %v505
        %541 = vmatpush.bf16.msra.mxu0 %v504
        %542 = vmatpush.bf16.msra.mxu0 %v503
        %543 = vmatmul.bf16.gmra.mxu0 %v375
        %v544 = vpop.f32.mrf.mxu0
        %v545 = vadd.f32 %v277, %v544
        %v546 = vpop.f32.mrf.mxu0
        %v547 = vadd.f32 %v277, %v546
        %548 = vmatmul.bf16.gmra.mxu0 %v377
        %v549 = vpop.f32.mrf.mxu0
        %v550 = vadd.f32 %v277, %v549
        %v551 = vpop.f32.mrf.mxu0
        %v552 = vadd.f32 %v277, %v551
        %553 = vmatmul.bf16.gmra.mxu0 %v379
        %v554 = vpop.f32.mrf.mxu0
        %v555 = vadd.f32 %v277, %v554
        %v556 = vpop.f32.mrf.mxu0
        %v557 = vadd.f32 %v277, %v556
        %558 = vmatmul.bf16.gmra.mxu0 %v381
        %v559 = vpop.f32.mrf.mxu0
        %v560 = vadd.f32 %v277, %v559
        %v561 = vpop.f32.mrf.mxu0
        %v562 = vadd.f32 %v277, %v561
        %563 = vmatmul.bf16.gmra.mxu0 %v383
        %v564 = vpop.f32.mrf.mxu0
        %v565 = vadd.f32 %v277, %v564
        %v566 = vpop.f32.mrf.mxu0
        %v567 = vadd.f32 %v277, %v566
        %568 = vmatmul.bf16.gmra.mxu0 %v385
        %v569 = vpop.f32.mrf.mxu0
        %v570 = vadd.f32 %v277, %v569
        %v571 = vpop.f32.mrf.mxu0
        %v572 = vadd.f32 %v277, %v571
        %573 = vmatmul.bf16.gmra.mxu0 %v387
        %v574 = vpop.f32.mrf.mxu0
        %v575 = vadd.f32 %v277, %v574
        %v576 = vpop.f32.mrf.mxu0
        %v577 = vadd.f32 %v277, %v576
        %578 = vmatmul.bf16.gmra.mxu0 %v389
        %v579 = vpop.f32.mrf.mxu0
        %v580 = vadd.f32 %v277, %v579
        %v581 = vpop.f32.mrf.mxu0
        %v582 = vadd.f32 %v277, %v581
        %583 = vmatmul.bf16.gmra.mxu0 %v391
        %v584 = vpop.f32.mrf.mxu0
        %v585 = vadd.f32 %v277, %v584
        %v586 = vpop.f32.mrf.mxu0
        %v587 = vadd.f32 %v277, %v586
        %588 = vmatmul.bf16.gmra.mxu0 %v393
        %v589 = vpop.f32.mrf.mxu0
        %v590 = vadd.f32 %v277, %v589
        %v591 = vpop.f32.mrf.mxu0
        %v592 = vadd.f32 %v277, %v591
        %593 = vmatmul.bf16.gmra.mxu0 %v395
        %v594 = vpop.f32.mrf.mxu0
        %v595 = vadd.f32 %v277, %v594
        %v596 = vpop.f32.mrf.mxu0
        %v597 = vadd.f32 %v277, %v596
        %598 = vmatmul.bf16.gmra.mxu0 %v397
        %v599 = vpop.f32.mrf.mxu0
        %v600 = vadd.f32 %v277, %v599
        %v601 = vpop.f32.mrf.mxu0
        %v602 = vadd.f32 %v277, %v601
        %603 = vmatmul.bf16.gmra.mxu0 %v399
        %v604 = vpop.f32.mrf.mxu0
        %v605 = vadd.f32 %v277, %v604
        %v606 = vpop.f32.mrf.mxu0
        %v607 = vadd.f32 %v277, %v606
        %608 = vmatmul.bf16.gmra.mxu0 %v401
        %v609 = vpop.f32.mrf.mxu0
        %v610 = vadd.f32 %v277, %v609
        %v611 = vpop.f32.mrf.mxu0
        %v612 = vadd.f32 %v277, %v611
        %613 = vmatmul.bf16.gmra.mxu0 %v403
        %v614 = vpop.f32.mrf.mxu0
        %v615 = vadd.f32 %v277, %v614
        %v616 = vpop.f32.mrf.mxu0
        %v617 = vadd.f32 %v277, %v616
        %618 = vmatmul.bf16.gmra.mxu0 %v405
        %v619 = vpop.f32.mrf.mxu0
        %v620 = vadd.f32 %v277, %v619
        %v621 = vpop.f32.mrf.mxu0
        %v622 = vadd.f32 %v277, %v621
        %623 = vdwg.mxu0
        %624 = vmatpush.bf16.msra.mxu0 %v518
        %625 = vmatpush.bf16.msra.mxu0 %v517
        %626 = vmatpush.bf16.msra.mxu0 %v516
        %627 = vmatpush.bf16.msra.mxu0 %v515
        %628 = vmatpush.bf16.msra.mxu0 %v514
        %629 = vmatpush.bf16.msra.mxu0 %v513
        %630 = vmatpush.bf16.msra.mxu0 %v512
        %631 = vmatpush.bf16.msra.mxu0 %v511
        %632 = vmatmul.bf16.gmra.mxu0 %v376
        %v633 = vpop.f32.mrf.mxu0
        %v634 = vadd.f32 %v545, %v633
        %v635 = vpop.f32.mrf.mxu0
        %v636 = vadd.f32 %v547, %v635
        %637 = vmatmul.bf16.gmra.mxu0 %v378
        %v638 = vpop.f32.mrf.mxu0
        %v639 = vadd.f32 %v550, %v638
        %v640 = vpop.f32.mrf.mxu0
        %v641 = vadd.f32 %v552, %v640
        %642 = vmatmul.bf16.gmra.mxu0 %v380
        %v643 = vpop.f32.mrf.mxu0
        %v644 = vadd.f32 %v555, %v643
        %v645 = vpop.f32.mrf.mxu0
        %v646 = vadd.f32 %v557, %v645
        %647 = vmatmul.bf16.gmra.mxu0 %v382
        %v648 = vpop.f32.mrf.mxu0
        %v649 = vadd.f32 %v560, %v648
        %v650 = vpop.f32.mrf.mxu0
        %v651 = vadd.f32 %v562, %v650
        %652 = vmatmul.bf16.gmra.mxu0 %v384
        %v653 = vpop.f32.mrf.mxu0
        %v654 = vadd.f32 %v565, %v653
        %v655 = vpop.f32.mrf.mxu0
        %v656 = vadd.f32 %v567, %v655
        %657 = vmatmul.bf16.gmra.mxu0 %v386
        %v658 = vpop.f32.mrf.mxu0
        %v659 = vadd.f32 %v570, %v658
        %v660 = vpop.f32.mrf.mxu0
        %v661 = vadd.f32 %v572, %v660
        %662 = vmatmul.bf16.gmra.mxu0 %v388
        %v663 = vpop.f32.mrf.mxu0
        %v664 = vadd.f32 %v575, %v663
        %v665 = vpop.f32.mrf.mxu0
        %v666 = vadd.f32 %v577, %v665
        %667 = vmatmul.bf16.gmra.mxu0 %v390
        %v668 = vpop.f32.mrf.mxu0
        %v669 = vadd.f32 %v580, %v668
        %v670 = vpop.f32.mrf.mxu0
        %v671 = vadd.f32 %v582, %v670
        %672 = vmatmul.bf16.gmra.mxu0 %v392
        %v673 = vpop.f32.mrf.mxu0
        %v674 = vadd.f32 %v585, %v673
        %v675 = vpop.f32.mrf.mxu0
        %v676 = vadd.f32 %v587, %v675
        %677 = vmatmul.bf16.gmra.mxu0 %v394
        %v678 = vpop.f32.mrf.mxu0
        %v679 = vadd.f32 %v590, %v678
        %v680 = vpop.f32.mrf.mxu0
        %v681 = vadd.f32 %v592, %v680
        %682 = vmatmul.bf16.gmra.mxu0 %v396
        %v683 = vpop.f32.mrf.mxu0
        %v684 = vadd.f32 %v595, %v683
        %v685 = vpop.f32.mrf.mxu0
        %v686 = vadd.f32 %v597, %v685
        %687 = vmatmul.bf16.gmra.mxu0 %v398
        %v688 = vpop.f32.mrf.mxu0
        %v689 = vadd.f32 %v600, %v688
        %v690 = vpop.f32.mrf.mxu0
        %v691 = vadd.f32 %v602, %v690
        %692 = vmatmul.bf16.gmra.mxu0 %v400
        %v693 = vpop.f32.mrf.mxu0
        %v694 = vadd.f32 %v605, %v693
        %v695 = vpop.f32.mrf.mxu0
        %v696 = vadd.f32 %v607, %v695
        %697 = vmatmul.bf16.gmra.mxu0 %v402
        %v698 = vpop.f32.mrf.mxu0
        %v699 = vadd.f32 %v610, %v698
        %v700 = vpop.f32.mrf.mxu0
        %v701 = vadd.f32 %v612, %v700
        %702 = vmatmul.bf16.gmra.mxu0 %v404
        %v703 = vpop.f32.mrf.mxu0
        %v704 = vadd.f32 %v615, %v703
        %v705 = vpop.f32.mrf.mxu0
        %v706 = vadd.f32 %v617, %v705
        %707 = vmatmul.bf16.gmra.mxu0 %v406
        %v708 = vpop.f32.mrf.mxu0
        %v709 = vadd.f32 %v620, %v708
        %v710 = vpop.f32.mrf.mxu0
        %v711 = vadd.f32 %v622, %v710
        %712 = vdwg.mxu0
        %v713 = vmax.f32 %v634, 0.0
        %v714 = vmax.f32 %v636, 0.0
        %v715 = vmax.f32 %v639, 0.0
        %v716 = vmax.f32 %v641, 0.0
        %v717 = vmax.f32 %v644, 0.0
        %v718 = vmax.f32 %v646, 0.0
        %v719 = vmax.f32 %v649, 0.0
        %v720 = vmax.f32 %v651, 0.0
        %v721 = vmax.f32 %v654, 0.0
        %v722 = vmax.f32 %v656, 0.0
        %v723 = vmax.f32 %v659, 0.0
        %v724 = vmax.f32 %v661, 0.0
        %v725 = vmax.f32 %v664, 0.0
        %v726 = vmax.f32 %v666, 0.0
        %v727 = vmax.f32 %v669, 0.0
        %v728 = vmax.f32 %v671, 0.0
        %v729 = vmax.f32 %v674, 0.0
        %v730 = vmax.f32 %v676, 0.0
        %v731 = vmax.f32 %v679, 0.0
        %v732 = vmax.f32 %v681, 0.0
        %v733 = vmax.f32 %v684, 0.0
        %v734 = vmax.f32 %v686, 0.0
        %v735 = vmax.f32 %v689, 0.0
        %v736 = vmax.f32 %v691, 0.0
        %v737 = vmax.f32 %v694, 0.0
        %v738 = vmax.f32 %v696, 0.0
        %v739 = vmax.f32 %v699, 0.0
        %v740 = vmax.f32 %v701, 0.0
        %v741 = vmax.f32 %v704, 0.0
        %v742 = vmax.f32 %v706, 0.0
        %v743 = vmax.f32 %v709, 0.0
        %v744 = vmax.f32 %v711, 0.0
        %v745 = vpack.c.bf16 %v713, %v713
        %v746 = vpack.c.bf16 %v714, %v714
        %v747 = vpack.c.bf16 %v715, %v715
        %v748 = vpack.c.bf16 %v716, %v716
        %v749 = vpack.c.bf16 %v717, %v717
        %v750 = vpack.c.bf16 %v718, %v718
        %v751 = vpack.c.bf16 %v719, %v719
        %v752 = vpack.c.bf16 %v720, %v720
        %v753 = vpack.c.bf16 %v721, %v721
        %v754 = vpack.c.bf16 %v722, %v722
        %v755 = vpack.c.bf16 %v723, %v723
        %v756 = vpack.c.bf16 %v724, %v724
        %v757 = vpack.c.bf16 %v725, %v725
        %v758 = vpack.c.bf16 %v726, %v726
        %v759 = vpack.c.bf16 %v727, %v727
        %v760 = vpack.c.bf16 %v728, %v728
        %v761 = vpack.c.bf16 %v729, %v729
        %v762 = vpack.c.bf16 %v730, %v730
        %v763 = vpack.c.bf16 %v731, %v731
        %v764 = vpack.c.bf16 %v732, %v732
        %v765 = vpack.c.bf16 %v733, %v733
        %v766 = vpack.c.bf16 %v734, %v734
        %v767 = vpack.c.bf16 %v735, %v735
        %v768 = vpack.c.bf16 %v736, %v736
        %v769 = vpack.c.bf16 %v737, %v737
        %v770 = vpack.c.bf16 %v738, %v738
        %v771 = vpack.c.bf16 %v739, %v739
        %v772 = vpack.c.bf16 %v740, %v740
        %v773 = vpack.c.bf16 %v741, %v741
        %v774 = vpack.c.bf16 %v742, %v742
        %v775 = vpack.c.bf16 %v743, %v743
        %v776 = vpack.c.bf16 %v744, %v744
        %777 = vst [vmem:[%s208] sm:$0xf] %v745
        %778 = vst [vmem:[%s208 + $0x4] sm:$0xf] %v746
        %779 = vst [vmem:[%s208 + $0x8] sm:$0xf] %v747
        %780 = vst [vmem:[%s208 + $0xc] sm:$0xf] %v748
        %781 = vst [vmem:[%s208 + $0x10] sm:$0xf] %v749
        %782 = vst [vmem:[%s208 + $0x14] sm:$0xf] %v750
        %783 = vst [vmem:[%s208 + $0x18] sm:$0xf] %v751
        %784 = vst [vmem:[%s208 + $0x1c] sm:$0xf] %v752
        %785 = vst [vmem:[%s208 + $0x20] sm:$0xf] %v753
        %786 = vst [vmem:[%s208 + $0x24] sm:$0xf] %v754
        %787 = vst [vmem:[%s208 + $0x28] sm:$0xf] %v755
        %788 = vst [vmem:[%s208 + $0x2c] sm:$0xf] %v756
        %789 = vst [vmem:[%s208 + $0x30] sm:$0xf] %v757
        %790 = vst [vmem:[%s208 + $0x34] sm:$0xf] %v758
        %791 = vst [vmem:[%s208 + $0x38] sm:$0xf] %v759
        %792 = vst [vmem:[%s208 + $0x3c] sm:$0xf] %v760
        %793 = vst [vmem:[%s208 + $0x40] sm:$0xf] %v761
        %794 = vst [vmem:[%s208 + $0x44] sm:$0xf] %v762
        %795 = vst [vmem:[%s208 + $0x48] sm:$0xf] %v763
        %796 = vst [vmem:[%s208 + $0x4c] sm:$0xf] %v764
        %797 = vst [vmem:[%s208 + $0x50] sm:$0xf] %v765
        %798 = vst [vmem:[%s208 + $0x54] sm:$0xf] %v766
        %799 = vst [vmem:[%s208 + $0x58] sm:$0xf] %v767
        %800 = vst [vmem:[%s208 + $0x5c] sm:$0xf] %v768
        %801 = vst [vmem:[%s208 + $0x60] sm:$0xf] %v769
        %802 = vst [vmem:[%s208 + $0x64] sm:$0xf] %v770
        %803 = vst [vmem:[%s208 + $0x68] sm:$0xf] %v771
        %804 = vst [vmem:[%s208 + $0x6c] sm:$0xf] %v772
        %805 = vst [vmem:[%s208 + $0x70] sm:$0xf] %v773
        %806 = vst [vmem:[%s208 + $0x74] sm:$0xf] %v774
        %807 = vst [vmem:[%s208 + $0x78] sm:$0xf] %v775
        %808 = vst [vmem:[%s208 + $0x7c] sm:$0xf] %v776
        %s809 = sand.u32 %s97, 1
        %s810 = scalar_lea.sflag [#allocation4], %s809
        %s811 = sand.u32 %s97, 1
        %s812 = smul.addr %s811, 128
        %s813 = scalar_lea.vmem [#allocation7], %s812
        // Predicated region
        $region41: #{tpu_custom_call.1} parent=31 // pred_check
          %p814 = pneg %p107
        $region42: #{tpu_custom_call.1} parent=31 // pred_check_branch
          %816 = sbr.rel (%p814) target = $region44
        $region43: #{tpu_custom_call.1} parent=31 // pred_region
          %s817 = smul.u32 32, %s21
          %819 = vsyncadd %s810, 0
          %s820 = smul.addr %s817, 4
          %s821 = scalar_lea.hbm %s3, %s820
          %s822 = sshll.u32 %s813, 4
          %s823 = int_to_ptr.vmem [resolvable:$true] %s822
          %s824 = sshll.u32 %s821, 4
          %s825 = int_to_ptr.hbm [resolvable:$true] %s824
          %830 = dma.vmem_to_hbm [thread:$0]  %s823, 2048, %s825, %s810, 64, 64, 4
        $region44: #{tpu_custom_call.1} parent=31 // pred_fallthru
          _
      $region32: #{tpu_custom_call.1} parent=5 // pred_fallthru
        _
      %p831 = scmp.le.s32.totalorder 2, %s16
      // Predicated region
      $region45: #{tpu_custom_call.1} parent=5 // pred_check
        %p832 = pneg %p831
      $region46: #{tpu_custom_call.1} parent=5 // pred_check_branch
        %834 = sbr.rel (%p832) target = $region48
      $region47: #{tpu_custom_call.1} parent=5 // pred_region
        %s835 = ssub.s32 %s16, 2
        // Predicated region
        $region49: #{tpu_custom_call.1} parent=47 // pred_check
          %p836 = pneg %p113
        $region50: #{tpu_custom_call.1} parent=47 // pred_check_branch
          %838 = sbr.rel (%p836) target = $region52
        $region51: #{tpu_custom_call.1} parent=47 // pred_region
          %s839 = sand.u32 %s98, 1
          %s840 = scalar_lea.sflag [#allocation4], %s839
          %s841 = sand.u32 %s98, 1
          %s842 = smul.addr %s841, 128
          %s843 = scalar_lea.vmem [#allocation7], %s842
          %845 = dma.done %s840, 2048
        $region52: #{tpu_custom_call.1} parent=47 // pred_fallthru
          _
      $region48: #{tpu_custom_call.1} parent=5 // pred_fallthru
        _
    $region6: #{tpu_custom_call.1} parent=1 // loop_footer
      %s20 = sadd.s32 1, %s16
    $region7: #{tpu_custom_call.1} parent=1 // loop_footer_branch
      %15 = sbr.rel target = $region3
    $region8: #{tpu_custom_call.1} parent=1 // loop_exit
      _
    %846 = vsyncpa [#allocation3], 1
    %s847 = scalar_lea.sflag [#allocation3], 1
    %848 = vsyncpa %s847, 1
    %849 = vsyncpa [#allocation6], 1
    %850 = vsyncpa [#allocation4], 1
    %s851 = scalar_lea.sflag [#allocation4], 1
    %852 = vsyncpa %s851, 1

</llo_original>
